<compile_context>
chip_gen: v7x
topology: tpu7x:2x2x1
jax: 0.10.0
libtpu: 0.0.40
codegen_flags: <defaults>
</compile_context>

<pallas_src>
import functools
import math

import jax
import jax.numpy as jnp
from jax.experimental import pallas as pl
from jax.experimental.pallas import tpu as pltpu


def _round_up(x: int, m: int) -> int:
    return ((x + m - 1) // m) * m


def _choose_batch_tiling(b: int, block_b: int):
    """Batch lives on the lane (last) axis.  Returns (tile_b, padded_b).

    * b < 256: one grid step whose block spans the whole (8-aligned) batch --
      a block equal to the full array dim may have any size, so padding is
      bounded by 7 rows.
    * b >= 256: tiles must be 128-lane aligned; pick the tile so that
      (a) tile_b <= block_b, (b) there are >= 2 grid steps (v7x megacore),
      (c) batch padding stays bounded by one tile.
    """
    if b < 256:
        tb = _round_up(b, 8)
        return tb, tb
    lanes = 128
    groups = -(-b // lanes)                      # 128-lane groups needed
    max_groups = max(1, block_b // lanes)        # per-tile cap (v6e roofline)
    n_tiles = max(2, -(-groups // max_groups))   # >= 2 steps for v7x megacore
    gpt = max(1, groups // n_tiles)
    n_tiles = -(-groups // gpt)
    tb = gpt * lanes
    return tb, tb * n_tiles


# ----------------------------- Pallas kernel --------------------------------

def _fused_fk_mlp_kernel(cs_ref, w1t_ref, b1t_ref, w2t_ref, b2t_ref, o_ref,
                         x_sc, *, link_offsets):
    """FK chain + Linear(12,H) -> SiLU -> Linear(H,H) on one batch tile.

    Everything is batch-on-lanes (transposed):
      cs_ref : (2q, TB)  f32   rows 0..q-1 = cos(theta), q..2q-1 = sin(theta)
      w1t    : (Hp, Kp)  bf16  layer-1 weight, torch (out,in) layout, 0-padded
      b1t    : (Hp, 1)   f32
      w2t    : (Hp, Hp)  bf16
      b2t    : (Hp, 1)   f32
      o_ref  : (Hp, TB)  f32
      x_sc   : (Kp, TB)  f32   VMEM scratch holding the FK feature slab x^T
    """
    cs = cs_ref[...]
    q = cs.shape[0] // 2
    tb = cs.shape[1]

    one = jnp.ones((1, tb), jnp.float32)
    zero = jnp.zeros((1, tb), jnp.float32)

    # Running end-effector transform: rotation rows + translation,
    # each a lane-dense (1, TB) row.
    r00, r01, r02 = one, zero, zero
    r10, r11, r12 = zero, one, zero
    r20, r21, r22 = zero, zero, one
    px, py, pz = zero, zero, zero

    # Serial chain, statically unrolled (q is small and compile-time known).
    # Each joint: p += R @ t_j ; R <- R @ Rz(theta_j)  (pure VPU element-wise).
    for j, (ox, oy, oz) in enumerate(link_offsets):
        c = cs[j:j + 1, :]
        s = cs[q + j:q + j + 1, :]
        # translation update uses R BEFORE this joint's rotation
        px = px + ox * r00 + oy * r01 + oz * r02
        py = py + ox * r10 + oy * r11 + oz * r12
        pz = pz + ox * r20 + oy * r21 + oz * r22
        # R @ Rz(theta): col0' = c*col0 + s*col1, col1' = c*col1 - s*col0
        n00 = c * r00 + s * r01
        n01 = c * r01 - s * r00
        n10 = c * r10 + s * r11
        n11 = c * r11 - s * r10
        n20 = c * r20 + s * r21
        n21 = c * r21 - s * r20
        r00, r01, r10, r11, r20, r21 = n00, n01, n10, n11, n20, n21

    # Feature slab x^T (Kp, TB): rows = [pos(3), rot row-major(9), zero pad].
    feats = (px, py, pz, r00, r01, r02, r10, r11, r12, r20, r21, r22)
    for row, val in enumerate(feats):
        x_sc[row:row + 1, :] = val
    k_pad = x_sc.shape[0]
    if k_pad > len(feats):
        x_sc[len(feats):, :] = jnp.zeros((k_pad - len(feats), tb), jnp.float32)
    x_t = x_sc[...]                                            # (Kp, TB)

    # Transposed MLP: bf16 MXU operands, f32 accumulation, f32 activations.
    h = jnp.dot(w1t_ref[...], x_t.astype(w1t_ref.dtype),
                preferred_element_type=jnp.float32) + b1t_ref[...]
    h = h * jax.nn.sigmoid(h)                                  # SiLU in f32
    out = jnp.dot(w2t_ref[...], h.astype(w2t_ref.dtype),
                  preferred_element_type=jnp.float32) + b2t_ref[...]
    o_ref[...] = out.astype(o_ref.dtype)                       # (Hp, TB) lane-dense


# ------------------------------ host wrapper ---------------------------------

@functools.partial(
    jax.jit, static_argnames=("link_offsets", "hidden_dim", "block_b"))
def _forward(joint_pos, w1t, b1t, w2t, b2t, *, link_offsets, hidden_dim,
             block_b=512):
    b, q = joint_pos.shape
    h_pad, k_pad = w1t.shape

    tb, b_pad = _choose_batch_tiling(b, block_b)
    n_tiles = b_pad // tb

    # batch on lanes: (q, b_pad)
    jp_t = joint_pos.T
    if b_pad != b:
        jp_t = jnp.pad(jp_t, ((0, 0), (0, b_pad - b)))

    # cos/sin of all joints in ONE fused element-wise op, packed into a single
    # (2q, b_pad) slab so the kernel gets exactly one activation input.
    cs = jnp.concatenate([jnp.cos(jp_t), jnp.sin(jp_t)], axis=0)

    flops = 2 * b_pad * (k_pad * h_pad + h_pad * h_pad) + 30 * b_pad * q
    transcendentals = b_pad * h_pad                           # in-kernel sigmoid
    bytes_accessed = (2 * b_pad * q * 4
                      + (k_pad * h_pad + h_pad * h_pad) * w1t.dtype.itemsize
                      + 2 * h_pad * 4
                      + b_pad * h_pad * 4)

    kernel = functools.partial(_fused_fk_mlp_kernel, link_offsets=link_offsets)

    out_t = pl.pallas_call(
        kernel,
        out_shape=jax.ShapeDtypeStruct((h_pad, b_pad), jnp.float32),
        grid_spec=pltpu.PrefetchScalarGridSpec(
            num_scalar_prefetch=0,
            grid=(n_tiles,),
            in_specs=[
                pl.BlockSpec((2 * q, tb), lambda i: (0, i)),      # cos/sin slab
                pl.BlockSpec((h_pad, k_pad), lambda i: (0, 0)),   # W1^T (resident)
                pl.BlockSpec((h_pad, 1), lambda i: (0, 0)),       # b1
                pl.BlockSpec((h_pad, h_pad), lambda i: (0, 0)),   # W2^T (resident)
                pl.BlockSpec((h_pad, 1), lambda i: (0, 0)),       # b2
            ],
            out_specs=pl.BlockSpec((h_pad, tb), lambda i: (0, i)),
            scratch_shapes=[pltpu.VMEM((k_pad, tb), jnp.float32)],
        ),
        compiler_params=pltpu.CompilerParams(
            dimension_semantics=("parallel",),
            vmem_limit_bytes=32 * 1024 * 1024),
        cost_estimate=pl.CostEstimate(
            flops=flops,
            transcendentals=transcendentals,
            bytes_accessed=bytes_accessed),
    )(cs, w1t, b1t, w2t, b2t)

    # back to (B, hidden_dim) row-major; padded rows / lanes sliced off
    return out_t[:hidden_dim, :b].T


# ----------------------------- module wrapper --------------------------------

class DiffFwdKinEncoderPallas:
    def __init__(self, q_dim: int, hidden_dim: int, key,
                 param_dtype=jnp.bfloat16):
        input_dim = 3 + 9  # eef position (3) + flattened rotation (9)
        self.q_dim = q_dim
        self.hidden_dim = hidden_dim
        self.k_pad = 16                          # layer-1 contraction rows
        self.h_pad = _round_up(hidden_dim, 8)    # sublane-aligned hidden rows

        k1, k2, k3, k4, k5 = jax.random.split(key, 5)
        lim1 = 1.0 / math.sqrt(input_dim)
        lim2 = 1.0 / math.sqrt(hidden_dim)
        # torch nn.Linear layout: weight is (out_features, in_features),
        # which is exactly the transposed-MLP operand the kernel wants.
        w1 = jax.random.uniform(k1, (hidden_dim, input_dim), jnp.float32, -lim1, lim1)
        b1 = jax.random.uniform(k2, (hidden_dim,), jnp.float32, -lim1, lim1)
        w2 = jax.random.uniform(k3, (hidden_dim, hidden_dim), jnp.float32, -lim2, lim2)
        b2 = jax.random.uniform(k4, (hidden_dim,), jnp.float32, -lim2, lim2)

        # Zero-pad; padded rows/cols are exactly zero so the first
        # `hidden_dim` output rows are unaffected.
        self.w1t = (jnp.zeros((self.h_pad, self.k_pad), param_dtype)
                    .at[:hidden_dim, :input_dim].set(w1.astype(param_dtype)))
        self.b1t = (jnp.zeros((self.h_pad, 1), jnp.float32)
                    .at[:hidden_dim, 0].set(b1))
        self.w2t = (jnp.zeros((self.h_pad, self.h_pad), param_dtype)
                    .at[:hidden_dim, :hidden_dim].set(w2.astype(param_dtype)))
        self.b2t = (jnp.zeros((self.h_pad, 1), jnp.float32)
                    .at[:hidden_dim, 0].set(b2))

        # Fixed synthetic chain geometry, baked into the kernel as compile-time
        # constants (static geometry, not a learned parameter).
        # TODO(synk): real Panda link offsets come from robot.xml (not loadable here).
        offs = 0.1 * jax.random.normal(k5, (q_dim, 3), jnp.float32)
        self.link_offsets = tuple(
            tuple(float(v) for v in row) for row in jax.device_get(offs))

    def __call__(self, joint_pos):
        return _forward(joint_pos, self.w1t, self.b1t, self.w2t, self.b2t,
                        link_offsets=self.link_offsets,
                        hidden_dim=self.hidden_dim,
                        block_b=512)


# ------------------------------ plain-JAX reference ---------------------------

def _fk_reference(joint_pos, link_offsets):
    """4x4 homogeneous-transform reference of the same synthetic chain."""
    b = joint_pos.shape[0]
    T = jnp.broadcast_to(jnp.eye(4, dtype=jnp.float32), (b, 4, 4))
    for j, (ox, oy, oz) in enumerate(link_offsets):
        th = joint_pos[:, j]
        c, s = jnp.cos(th), jnp.sin(th)
        z = jnp.zeros_like(c)
        o = jnp.ones_like(c)
        Tj = jnp.stack([
            jnp.stack([c, -s, z, ox * o], axis=-1),
            jnp.stack([s, c, z, oy * o], axis=-1),
            jnp.stack([z, z, o, oz * o], axis=-1),
            jnp.stack([z, z, z, o], axis=-1),
        ], axis=-2)
        T = jnp.einsum('bij,bjk->bik', T, Tj,
                       precision=jax.lax.Precision.HIGHEST)
    return T


def _mlp_reference(eef_pose, w1t, b1t, w2t, b2t, hidden_dim):
    w1 = w1t[:hidden_dim, :12].astype(jnp.float32)
    b1 = b1t[:hidden_dim, 0]
    w2 = w2t[:hidden_dim, :hidden_dim].astype(jnp.float32)
    b2 = b2t[:hidden_dim, 0]
    x = eef_pose.astype(jnp.bfloat16).astype(jnp.float32)   # emulate bf16 operands
    h = jnp.matmul(x, w1.T, precision=jax.lax.Precision.HIGHEST) + b1
    h = h * jax.nn.sigmoid(h)
    h = h.astype(jnp.bfloat16).astype(jnp.float32)
    out = jnp.matmul(h, w2.T, precision=jax.lax.Precision.HIGHEST) + b2
    return out


# ---------------------------------- main --------------------------------------

if __name__ == "__main__":
    key = jax.random.PRNGKey(0)
    k_params, k_q = jax.random.split(key)

    B, q_dim, hidden_dim = 8, 7, 32
    module = DiffFwdKinEncoderPallas(q_dim=q_dim, hidden_dim=hidden_dim, key=k_params)

    joint_pos = jax.random.uniform(k_q, (B, q_dim), jnp.float32, -jnp.pi, jnp.pi)

    out = jax.block_until_ready(module(joint_pos))
    assert out.shape == (B, hidden_dim) and out.dtype == jnp.float32

    # correctness check against plain-JAX reference (same synthetic chain,
    # same bf16 weight/operand quantization)
    T = _fk_reference(joint_pos, module.link_offsets)
    eef_pose = jnp.concatenate([T[:, :3, 3], T[:, :3, :3].reshape(B, 9)], axis=-1)
    ref = _mlp_reference(eef_pose, module.w1t, module.b1t, module.w2t, module.b2t,
                         hidden_dim)
    err = float(jnp.max(jnp.abs(out - ref)))
    assert jnp.allclose(out, ref, atol=2e-3, rtol=2e-3), f"max abs err {err}"

    print("KERNEL_OK")
</pallas_src>

<mosaic_0001>
module attributes {stable_mosaic.version = 11 : i64} {
  func.func @_fused_fk_mlp_kernel(%arg0: i32, %arg1: memref<14x8xf32, #tpu.memory_space<vmem>>, %arg2: memref<32x16xbf16, #tpu.memory_space<vmem>>, %arg3: memref<32x1xf32, #tpu.memory_space<vmem>>, %arg4: memref<32x32xbf16, #tpu.memory_space<vmem>>, %arg5: memref<32x1xf32, #tpu.memory_space<vmem>>, %arg6: memref<32x8xf32, #tpu.memory_space<vmem>>, %arg7: memref<16x8xf32, #tpu.memory_space<vmem>>) attributes {dimension_semantics = [#tpu.dimension_semantics<parallel>], iteration_bounds = array<i64: 1>, scalar_prefetch = 0 : i64, scratch_operands = 1 : i64, tpu.core_type = #tpu.core_type<tc>, window_params = [{transform_indices = @transform_0, window_bounds = array<i64: 14, 8>}, {pipeline_mode = #tpu.pipeline_mode<synchronous>, transform_indices = @transform_1, window_bounds = array<i64: 32, 16>}, {pipeline_mode = #tpu.pipeline_mode<synchronous>, transform_indices = @transform_2, window_bounds = array<i64: 32, 1>}, {pipeline_mode = #tpu.pipeline_mode<synchronous>, transform_indices = @transform_3, window_bounds = array<i64: 32, 32>}, {pipeline_mode = #tpu.pipeline_mode<synchronous>, transform_indices = @transform_4, window_bounds = array<i64: 32, 1>}, {transform_indices = @transform_5, window_bounds = array<i64: 32, 8>}]} {
    %c0 = arith.constant 0 : index
    %c0_0 = arith.constant 0 : index
    %0 = vector.load %arg1[%c0, %c0_0] : memref<14x8xf32, #tpu.memory_space<vmem>>, vector<14x8xf32>
    %cst = arith.constant 1.000000e+00 : f32
    %1 = vector.broadcast %cst : f32 to vector<1x8xf32>
    %cst_1 = arith.constant 0.000000e+00 : f32
    %2 = vector.broadcast %cst_1 : f32 to vector<1x8xf32>
    %3 = vector.extract_strided_slice %0 {offsets = [0, 0], sizes = [1, 8], strides = [1, 1]} : vector<14x8xf32> to vector<1x8xf32>
    %4 = vector.extract_strided_slice %0 {offsets = [7, 0], sizes = [1, 8], strides = [1, 1]} : vector<14x8xf32> to vector<1x8xf32>
    %cst_2 = arith.constant 0.126152858 : f32
    %5 = vector.broadcast %cst_2 : f32 to vector<1x8xf32>
    %6 = arith.mulf %5, %1 : vector<1x8xf32>
    %7 = arith.addf %2, %6 : vector<1x8xf32>
    %cst_3 = arith.constant -0.0404695086 : f32
    %8 = vector.broadcast %cst_3 : f32 to vector<1x8xf32>
    %9 = arith.mulf %8, %2 : vector<1x8xf32>
    %10 = arith.addf %7, %9 : vector<1x8xf32>
    %cst_4 = arith.constant 7.01148877E-4 : f32
    %11 = vector.broadcast %cst_4 : f32 to vector<1x8xf32>
    %12 = arith.mulf %11, %2 : vector<1x8xf32>
    %13 = arith.addf %10, %12 : vector<1x8xf32>
    %cst_5 = arith.constant 0.126152858 : f32
    %14 = vector.broadcast %cst_5 : f32 to vector<1x8xf32>
    %15 = arith.mulf %14, %2 : vector<1x8xf32>
    %16 = arith.addf %2, %15 : vector<1x8xf32>
    %cst_6 = arith.constant -0.0404695086 : f32
    %17 = vector.broadcast %cst_6 : f32 to vector<1x8xf32>
    %18 = arith.mulf %17, %1 : vector<1x8xf32>
    %19 = arith.addf %16, %18 : vector<1x8xf32>
    %cst_7 = arith.constant 7.01148877E-4 : f32
    %20 = vector.broadcast %cst_7 : f32 to vector<1x8xf32>
    %21 = arith.mulf %20, %2 : vector<1x8xf32>
    %22 = arith.addf %19, %21 : vector<1x8xf32>
    %cst_8 = arith.constant 0.126152858 : f32
    %23 = vector.broadcast %cst_8 : f32 to vector<1x8xf32>
    %24 = arith.mulf %23, %2 : vector<1x8xf32>
    %25 = arith.addf %2, %24 : vector<1x8xf32>
    %cst_9 = arith.constant -0.0404695086 : f32
    %26 = vector.broadcast %cst_9 : f32 to vector<1x8xf32>
    %27 = arith.mulf %26, %2 : vector<1x8xf32>
    %28 = arith.addf %25, %27 : vector<1x8xf32>
    %cst_10 = arith.constant 7.01148877E-4 : f32
    %29 = vector.broadcast %cst_10 : f32 to vector<1x8xf32>
    %30 = arith.mulf %29, %1 : vector<1x8xf32>
    %31 = arith.addf %28, %30 : vector<1x8xf32>
    %32 = arith.mulf %3, %1 : vector<1x8xf32>
    %33 = arith.mulf %4, %2 : vector<1x8xf32>
    %34 = arith.addf %32, %33 : vector<1x8xf32>
    %35 = arith.mulf %3, %2 : vector<1x8xf32>
    %36 = arith.mulf %4, %1 : vector<1x8xf32>
    %37 = arith.subf %35, %36 : vector<1x8xf32>
    %38 = arith.mulf %3, %2 : vector<1x8xf32>
    %39 = arith.mulf %4, %1 : vector<1x8xf32>
    %40 = arith.addf %38, %39 : vector<1x8xf32>
    %41 = arith.mulf %3, %1 : vector<1x8xf32>
    %42 = arith.mulf %4, %2 : vector<1x8xf32>
    %43 = arith.subf %41, %42 : vector<1x8xf32>
    %44 = arith.mulf %3, %2 : vector<1x8xf32>
    %45 = arith.mulf %4, %2 : vector<1x8xf32>
    %46 = arith.addf %44, %45 : vector<1x8xf32>
    %47 = arith.mulf %3, %2 : vector<1x8xf32>
    %48 = arith.mulf %4, %2 : vector<1x8xf32>
    %49 = arith.subf %47, %48 : vector<1x8xf32>
    %50 = vector.extract_strided_slice %0 {offsets = [1, 0], sizes = [1, 8], strides = [1, 1]} : vector<14x8xf32> to vector<1x8xf32>
    %51 = vector.extract_strided_slice %0 {offsets = [8, 0], sizes = [1, 8], strides = [1, 1]} : vector<14x8xf32> to vector<1x8xf32>
    %cst_11 = arith.constant -0.0597698688 : f32
    %52 = vector.broadcast %cst_11 : f32 to vector<1x8xf32>
    %53 = arith.mulf %52, %34 : vector<1x8xf32>
    %54 = arith.addf %13, %53 : vector<1x8xf32>
    %cst_12 = arith.constant -0.0138328439 : f32
    %55 = vector.broadcast %cst_12 : f32 to vector<1x8xf32>
    %56 = arith.mulf %55, %37 : vector<1x8xf32>
    %57 = arith.addf %54, %56 : vector<1x8xf32>
    %cst_13 = arith.constant -0.0320528336 : f32
    %58 = vector.broadcast %cst_13 : f32 to vector<1x8xf32>
    %59 = arith.mulf %58, %2 : vector<1x8xf32>
    %60 = arith.addf %57, %59 : vector<1x8xf32>
    %cst_14 = arith.constant -0.0597698688 : f32
    %61 = vector.broadcast %cst_14 : f32 to vector<1x8xf32>
    %62 = arith.mulf %61, %40 : vector<1x8xf32>
    %63 = arith.addf %22, %62 : vector<1x8xf32>
    %cst_15 = arith.constant -0.0138328439 : f32
    %64 = vector.broadcast %cst_15 : f32 to vector<1x8xf32>
    %65 = arith.mulf %64, %43 : vector<1x8xf32>
    %66 = arith.addf %63, %65 : vector<1x8xf32>
    %cst_16 = arith.constant -0.0320528336 : f32
    %67 = vector.broadcast %cst_16 : f32 to vector<1x8xf32>
    %68 = arith.mulf %67, %2 : vector<1x8xf32>
    %69 = arith.addf %66, %68 : vector<1x8xf32>
    %cst_17 = arith.constant -0.0597698688 : f32
    %70 = vector.broadcast %cst_17 : f32 to vector<1x8xf32>
    %71 = arith.mulf %70, %46 : vector<1x8xf32>
    %72 = arith.addf %31, %71 : vector<1x8xf32>
    %cst_18 = arith.constant -0.0138328439 : f32
    %73 = vector.broadcast %cst_18 : f32 to vector<1x8xf32>
    %74 = arith.mulf %73, %49 : vector<1x8xf32>
    %75 = arith.addf %72, %74 : vector<1x8xf32>
    %cst_19 = arith.constant -0.0320528336 : f32
    %76 = vector.broadcast %cst_19 : f32 to vector<1x8xf32>
    %77 = arith.mulf %76, %1 : vector<1x8xf32>
    %78 = arith.addf %75, %77 : vector<1x8xf32>
    %79 = arith.mulf %50, %34 : vector<1x8xf32>
    %80 = arith.mulf %51, %37 : vector<1x8xf32>
    %81 = arith.addf %79, %80 : vector<1x8xf32>
    %82 = arith.mulf %50, %37 : vector<1x8xf32>
    %83 = arith.mulf %51, %34 : vector<1x8xf32>
    %84 = arith.subf %82, %83 : vector<1x8xf32>
    %85 = arith.mulf %50, %40 : vector<1x8xf32>
    %86 = arith.mulf %51, %43 : vector<1x8xf32>
    %87 = arith.addf %85, %86 : vector<1x8xf32>
    %88 = arith.mulf %50, %43 : vector<1x8xf32>
    %89 = arith.mulf %51, %40 : vector<1x8xf32>
    %90 = arith.subf %88, %89 : vector<1x8xf32>
    %91 = arith.mulf %50, %46 : vector<1x8xf32>
    %92 = arith.mulf %51, %49 : vector<1x8xf32>
    %93 = arith.addf %91, %92 : vector<1x8xf32>
    %94 = arith.mulf %50, %49 : vector<1x8xf32>
    %95 = arith.mulf %51, %46 : vector<1x8xf32>
    %96 = arith.subf %94, %95 : vector<1x8xf32>
    %97 = vector.extract_strided_slice %0 {offsets = [2, 0], sizes = [1, 8], strides = [1, 1]} : vector<14x8xf32> to vector<1x8xf32>
    %98 = vector.extract_strided_slice %0 {offsets = [9, 0], sizes = [1, 8], strides = [1, 1]} : vector<14x8xf32> to vector<1x8xf32>
    %cst_20 = arith.constant 0.0685322955 : f32
    %99 = vector.broadcast %cst_20 : f32 to vector<1x8xf32>
    %100 = arith.mulf %99, %81 : vector<1x8xf32>
    %101 = arith.addf %60, %100 : vector<1x8xf32>
    %cst_21 = arith.constant 0.0342549942 : f32
    %102 = vector.broadcast %cst_21 : f32 to vector<1x8xf32>
    %103 = arith.mulf %102, %84 : vector<1x8xf32>
    %104 = arith.addf %101, %103 : vector<1x8xf32>
    %cst_22 = arith.constant -0.166475385 : f32
    %105 = vector.broadcast %cst_22 : f32 to vector<1x8xf32>
    %106 = arith.mulf %105, %2 : vector<1x8xf32>
    %107 = arith.addf %104, %106 : vector<1x8xf32>
    %cst_23 = arith.constant 0.0685322955 : f32
    %108 = vector.broadcast %cst_23 : f32 to vector<1x8xf32>
    %109 = arith.mulf %108, %87 : vector<1x8xf32>
    %110 = arith.addf %69, %109 : vector<1x8xf32>
    %cst_24 = arith.constant 0.0342549942 : f32
    %111 = vector.broadcast %cst_24 : f32 to vector<1x8xf32>
    %112 = arith.mulf %111, %90 : vector<1x8xf32>
    %113 = arith.addf %110, %112 : vector<1x8xf32>
    %cst_25 = arith.constant -0.166475385 : f32
    %114 = vector.broadcast %cst_25 : f32 to vector<1x8xf32>
    %115 = arith.mulf %114, %2 : vector<1x8xf32>
    %116 = arith.addf %113, %115 : vector<1x8xf32>
    %cst_26 = arith.constant 0.0685322955 : f32
    %117 = vector.broadcast %cst_26 : f32 to vector<1x8xf32>
    %118 = arith.mulf %117, %93 : vector<1x8xf32>
    %119 = arith.addf %78, %118 : vector<1x8xf32>
    %cst_27 = arith.constant 0.0342549942 : f32
    %120 = vector.broadcast %cst_27 : f32 to vector<1x8xf32>
    %121 = arith.mulf %120, %96 : vector<1x8xf32>
    %122 = arith.addf %119, %121 : vector<1x8xf32>
    %cst_28 = arith.constant -0.166475385 : f32
    %123 = vector.broadcast %cst_28 : f32 to vector<1x8xf32>
    %124 = arith.mulf %123, %1 : vector<1x8xf32>
    %125 = arith.addf %122, %124 : vector<1x8xf32>
    %126 = arith.mulf %97, %81 : vector<1x8xf32>
    %127 = arith.mulf %98, %84 : vector<1x8xf32>
    %128 = arith.addf %126, %127 : vector<1x8xf32>
    %129 = arith.mulf %97, %84 : vector<1x8xf32>
    %130 = arith.mulf %98, %81 : vector<1x8xf32>
    %131 = arith.subf %129, %130 : vector<1x8xf32>
    %132 = arith.mulf %97, %87 : vector<1x8xf32>
    %133 = arith.mulf %98, %90 : vector<1x8xf32>
    %134 = arith.addf %132, %133 : vector<1x8xf32>
    %135 = arith.mulf %97, %90 : vector<1x8xf32>
    %136 = arith.mulf %98, %87 : vector<1x8xf32>
    %137 = arith.subf %135, %136 : vector<1x8xf32>
    %138 = arith.mulf %97, %93 : vector<1x8xf32>
    %139 = arith.mulf %98, %96 : vector<1x8xf32>
    %140 = arith.addf %138, %139 : vector<1x8xf32>
    %141 = arith.mulf %97, %96 : vector<1x8xf32>
    %142 = arith.mulf %98, %93 : vector<1x8xf32>
    %143 = arith.subf %141, %142 : vector<1x8xf32>
    %144 = vector.extract_strided_slice %0 {offsets = [3, 0], sizes = [1, 8], strides = [1, 1]} : vector<14x8xf32> to vector<1x8xf32>
    %145 = vector.extract_strided_slice %0 {offsets = [10, 0], sizes = [1, 8], strides = [1, 1]} : vector<14x8xf32> to vector<1x8xf32>
    %cst_29 = arith.constant 0.108690225 : f32
    %146 = vector.broadcast %cst_29 : f32 to vector<1x8xf32>
    %147 = arith.mulf %146, %128 : vector<1x8xf32>
    %148 = arith.addf %107, %147 : vector<1x8xf32>
    %cst_30 = arith.constant 0.0747811198 : f32
    %149 = vector.broadcast %cst_30 : f32 to vector<1x8xf32>
    %150 = arith.mulf %149, %131 : vector<1x8xf32>
    %151 = arith.addf %148, %150 : vector<1x8xf32>
    %cst_31 = arith.constant 0.094146423 : f32
    %152 = vector.broadcast %cst_31 : f32 to vector<1x8xf32>
    %153 = arith.mulf %152, %2 : vector<1x8xf32>
    %154 = arith.addf %151, %153 : vector<1x8xf32>
    %cst_32 = arith.constant 0.108690225 : f32
    %155 = vector.broadcast %cst_32 : f32 to vector<1x8xf32>
    %156 = arith.mulf %155, %134 : vector<1x8xf32>
    %157 = arith.addf %116, %156 : vector<1x8xf32>
    %cst_33 = arith.constant 0.0747811198 : f32
    %158 = vector.broadcast %cst_33 : f32 to vector<1x8xf32>
    %159 = arith.mulf %158, %137 : vector<1x8xf32>
    %160 = arith.addf %157, %159 : vector<1x8xf32>
    %cst_34 = arith.constant 0.094146423 : f32
    %161 = vector.broadcast %cst_34 : f32 to vector<1x8xf32>
    %162 = arith.mulf %161, %2 : vector<1x8xf32>
    %163 = arith.addf %160, %162 : vector<1x8xf32>
    %cst_35 = arith.constant 0.108690225 : f32
    %164 = vector.broadcast %cst_35 : f32 to vector<1x8xf32>
    %165 = arith.mulf %164, %140 : vector<1x8xf32>
    %166 = arith.addf %125, %165 : vector<1x8xf32>
    %cst_36 = arith.constant 0.0747811198 : f32
    %167 = vector.broadcast %cst_36 : f32 to vector<1x8xf32>
    %168 = arith.mulf %167, %143 : vector<1x8xf32>
    %169 = arith.addf %166, %168 : vector<1x8xf32>
    %cst_37 = arith.constant 0.094146423 : f32
    %170 = vector.broadcast %cst_37 : f32 to vector<1x8xf32>
    %171 = arith.mulf %170, %1 : vector<1x8xf32>
    %172 = arith.addf %169, %171 : vector<1x8xf32>
    %173 = arith.mulf %144, %128 : vector<1x8xf32>
    %174 = arith.mulf %145, %131 : vector<1x8xf32>
    %175 = arith.addf %173, %174 : vector<1x8xf32>
    %176 = arith.mulf %144, %131 : vector<1x8xf32>
    %177 = arith.mulf %145, %128 : vector<1x8xf32>
    %178 = arith.subf %176, %177 : vector<1x8xf32>
    %179 = arith.mulf %144, %134 : vector<1x8xf32>
    %180 = arith.mulf %145, %137 : vector<1x8xf32>
    %181 = arith.addf %179, %180 : vector<1x8xf32>
    %182 = arith.mulf %144, %137 : vector<1x8xf32>
    %183 = arith.mulf %145, %134 : vector<1x8xf32>
    %184 = arith.subf %182, %183 : vector<1x8xf32>
    %185 = arith.mulf %144, %140 : vector<1x8xf32>
    %186 = arith.mulf %145, %143 : vector<1x8xf32>
    %187 = arith.addf %185, %186 : vector<1x8xf32>
    %188 = arith.mulf %144, %143 : vector<1x8xf32>
    %189 = arith.mulf %145, %140 : vector<1x8xf32>
    %190 = arith.subf %188, %189 : vector<1x8xf32>
    %191 = vector.extract_strided_slice %0 {offsets = [4, 0], sizes = [1, 8], strides = [1, 1]} : vector<14x8xf32> to vector<1x8xf32>
    %192 = vector.extract_strided_slice %0 {offsets = [11, 0], sizes = [1, 8], strides = [1, 1]} : vector<14x8xf32> to vector<1x8xf32>
    %cst_38 = arith.constant -0.0634165779 : f32
    %193 = vector.broadcast %cst_38 : f32 to vector<1x8xf32>
    %194 = arith.mulf %193, %175 : vector<1x8xf32>
    %195 = arith.addf %154, %194 : vector<1x8xf32>
    %cst_39 = arith.constant 0.0597084872 : f32
    %196 = vector.broadcast %cst_39 : f32 to vector<1x8xf32>
    %197 = arith.mulf %196, %178 : vector<1x8xf32>
    %198 = arith.addf %195, %197 : vector<1x8xf32>
    %cst_40 = arith.constant 0.164478824 : f32
    %199 = vector.broadcast %cst_40 : f32 to vector<1x8xf32>
    %200 = arith.mulf %199, %2 : vector<1x8xf32>
    %201 = arith.addf %198, %200 : vector<1x8xf32>
    %cst_41 = arith.constant -0.0634165779 : f32
    %202 = vector.broadcast %cst_41 : f32 to vector<1x8xf32>
    %203 = arith.mulf %202, %181 : vector<1x8xf32>
    %204 = arith.addf %163, %203 : vector<1x8xf32>
    %cst_42 = arith.constant 0.0597084872 : f32
    %205 = vector.broadcast %cst_42 : f32 to vector<1x8xf32>
    %206 = arith.mulf %205, %184 : vector<1x8xf32>
    %207 = arith.addf %204, %206 : vector<1x8xf32>
    %cst_43 = arith.constant 0.164478824 : f32
    %208 = vector.broadcast %cst_43 : f32 to vector<1x8xf32>
    %209 = arith.mulf %208, %2 : vector<1x8xf32>
    %210 = arith.addf %207, %209 : vector<1x8xf32>
    %cst_44 = arith.constant -0.0634165779 : f32
    %211 = vector.broadcast %cst_44 : f32 to vector<1x8xf32>
    %212 = arith.mulf %211, %187 : vector<1x8xf32>
    %213 = arith.addf %172, %212 : vector<1x8xf32>
    %cst_45 = arith.constant 0.0597084872 : f32
    %214 = vector.broadcast %cst_45 : f32 to vector<1x8xf32>
    %215 = arith.mulf %214, %190 : vector<1x8xf32>
    %216 = arith.addf %213, %215 : vector<1x8xf32>
    %cst_46 = arith.constant 0.164478824 : f32
    %217 = vector.broadcast %cst_46 : f32 to vector<1x8xf32>
    %218 = arith.mulf %217, %1 : vector<1x8xf32>
    %219 = arith.addf %216, %218 : vector<1x8xf32>
    %220 = arith.mulf %191, %175 : vector<1x8xf32>
    %221 = arith.mulf %192, %178 : vector<1x8xf32>
    %222 = arith.addf %220, %221 : vector<1x8xf32>
    %223 = arith.mulf %191, %178 : vector<1x8xf32>
    %224 = arith.mulf %192, %175 : vector<1x8xf32>
    %225 = arith.subf %223, %224 : vector<1x8xf32>
    %226 = arith.mulf %191, %181 : vector<1x8xf32>
    %227 = arith.mulf %192, %184 : vector<1x8xf32>
    %228 = arith.addf %226, %227 : vector<1x8xf32>
    %229 = arith.mulf %191, %184 : vector<1x8xf32>
    %230 = arith.mulf %192, %181 : vector<1x8xf32>
    %231 = arith.subf %229, %230 : vector<1x8xf32>
    %232 = arith.mulf %191, %187 : vector<1x8xf32>
    %233 = arith.mulf %192, %190 : vector<1x8xf32>
    %234 = arith.addf %232, %233 : vector<1x8xf32>
    %235 = arith.mulf %191, %190 : vector<1x8xf32>
    %236 = arith.mulf %192, %187 : vector<1x8xf32>
    %237 = arith.subf %235, %236 : vector<1x8xf32>
    %238 = vector.extract_strided_slice %0 {offsets = [5, 0], sizes = [1, 8], strides = [1, 1]} : vector<14x8xf32> to vector<1x8xf32>
    %239 = vector.extract_strided_slice %0 {offsets = [12, 0], sizes = [1, 8], strides = [1, 1]} : vector<14x8xf32> to vector<1x8xf32>
    %cst_47 = arith.constant -0.0975094363 : f32
    %240 = vector.broadcast %cst_47 : f32 to vector<1x8xf32>
    %241 = arith.mulf %240, %222 : vector<1x8xf32>
    %242 = arith.addf %201, %241 : vector<1x8xf32>
    %cst_48 = arith.constant -0.0069561163 : f32
    %243 = vector.broadcast %cst_48 : f32 to vector<1x8xf32>
    %244 = arith.mulf %243, %225 : vector<1x8xf32>
    %245 = arith.addf %242, %244 : vector<1x8xf32>
    %cst_49 = arith.constant -1.061350e-01 : f32
    %246 = vector.broadcast %cst_49 : f32 to vector<1x8xf32>
    %247 = arith.mulf %246, %2 : vector<1x8xf32>
    %248 = arith.addf %245, %247 : vector<1x8xf32>
    %cst_50 = arith.constant -0.0975094363 : f32
    %249 = vector.broadcast %cst_50 : f32 to vector<1x8xf32>
    %250 = arith.mulf %249, %228 : vector<1x8xf32>
    %251 = arith.addf %210, %250 : vector<1x8xf32>
    %cst_51 = arith.constant -0.0069561163 : f32
    %252 = vector.broadcast %cst_51 : f32 to vector<1x8xf32>
    %253 = arith.mulf %252, %231 : vector<1x8xf32>
    %254 = arith.addf %251, %253 : vector<1x8xf32>
    %cst_52 = arith.constant -1.061350e-01 : f32
    %255 = vector.broadcast %cst_52 : f32 to vector<1x8xf32>
    %256 = arith.mulf %255, %2 : vector<1x8xf32>
    %257 = arith.addf %254, %256 : vector<1x8xf32>
    %cst_53 = arith.constant -0.0975094363 : f32
    %258 = vector.broadcast %cst_53 : f32 to vector<1x8xf32>
    %259 = arith.mulf %258, %234 : vector<1x8xf32>
    %260 = arith.addf %219, %259 : vector<1x8xf32>
    %cst_54 = arith.constant -0.0069561163 : f32
    %261 = vector.broadcast %cst_54 : f32 to vector<1x8xf32>
    %262 = arith.mulf %261, %237 : vector<1x8xf32>
    %263 = arith.addf %260, %262 : vector<1x8xf32>
    %cst_55 = arith.constant -1.061350e-01 : f32
    %264 = vector.broadcast %cst_55 : f32 to vector<1x8xf32>
    %265 = arith.mulf %264, %1 : vector<1x8xf32>
    %266 = arith.addf %263, %265 : vector<1x8xf32>
    %267 = arith.mulf %238, %222 : vector<1x8xf32>
    %268 = arith.mulf %239, %225 : vector<1x8xf32>
    %269 = arith.addf %267, %268 : vector<1x8xf32>
    %270 = arith.mulf %238, %225 : vector<1x8xf32>
    %271 = arith.mulf %239, %222 : vector<1x8xf32>
    %272 = arith.subf %270, %271 : vector<1x8xf32>
    %273 = arith.mulf %238, %228 : vector<1x8xf32>
    %274 = arith.mulf %239, %231 : vector<1x8xf32>
    %275 = arith.addf %273, %274 : vector<1x8xf32>
    %276 = arith.mulf %238, %231 : vector<1x8xf32>
    %277 = arith.mulf %239, %228 : vector<1x8xf32>
    %278 = arith.subf %276, %277 : vector<1x8xf32>
    %279 = arith.mulf %238, %234 : vector<1x8xf32>
    %280 = arith.mulf %239, %237 : vector<1x8xf32>
    %281 = arith.addf %279, %280 : vector<1x8xf32>
    %282 = arith.mulf %238, %237 : vector<1x8xf32>
    %283 = arith.mulf %239, %234 : vector<1x8xf32>
    %284 = arith.subf %282, %283 : vector<1x8xf32>
    %285 = vector.extract_strided_slice %0 {offsets = [6, 0], sizes = [1, 8], strides = [1, 1]} : vector<14x8xf32> to vector<1x8xf32>
    %286 = vector.extract_strided_slice %0 {offsets = [13, 0], sizes = [1, 8], strides = [1, 1]} : vector<14x8xf32> to vector<1x8xf32>
    %cst_56 = arith.constant 0.082713142 : f32
    %287 = vector.broadcast %cst_56 : f32 to vector<1x8xf32>
    %288 = arith.mulf %287, %269 : vector<1x8xf32>
    %289 = arith.addf %248, %288 : vector<1x8xf32>
    %cst_57 = arith.constant -0.0028942246 : f32
    %290 = vector.broadcast %cst_57 : f32 to vector<1x8xf32>
    %291 = arith.mulf %290, %272 : vector<1x8xf32>
    %292 = arith.addf %289, %291 : vector<1x8xf32>
    %cst_58 = arith.constant -0.0455686562 : f32
    %293 = vector.broadcast %cst_58 : f32 to vector<1x8xf32>
    %294 = arith.mulf %293, %2 : vector<1x8xf32>
    %295 = arith.addf %292, %294 : vector<1x8xf32>
    %cst_59 = arith.constant 0.082713142 : f32
    %296 = vector.broadcast %cst_59 : f32 to vector<1x8xf32>
    %297 = arith.mulf %296, %275 : vector<1x8xf32>
    %298 = arith.addf %257, %297 : vector<1x8xf32>
    %cst_60 = arith.constant -0.0028942246 : f32
    %299 = vector.broadcast %cst_60 : f32 to vector<1x8xf32>
    %300 = arith.mulf %299, %278 : vector<1x8xf32>
    %301 = arith.addf %298, %300 : vector<1x8xf32>
    %cst_61 = arith.constant -0.0455686562 : f32
    %302 = vector.broadcast %cst_61 : f32 to vector<1x8xf32>
    %303 = arith.mulf %302, %2 : vector<1x8xf32>
    %304 = arith.addf %301, %303 : vector<1x8xf32>
    %cst_62 = arith.constant 0.082713142 : f32
    %305 = vector.broadcast %cst_62 : f32 to vector<1x8xf32>
    %306 = arith.mulf %305, %281 : vector<1x8xf32>
    %307 = arith.addf %266, %306 : vector<1x8xf32>
    %cst_63 = arith.constant -0.0028942246 : f32
    %308 = vector.broadcast %cst_63 : f32 to vector<1x8xf32>
    %309 = arith.mulf %308, %284 : vector<1x8xf32>
    %310 = arith.addf %307, %309 : vector<1x8xf32>
    %cst_64 = arith.constant -0.0455686562 : f32
    %311 = vector.broadcast %cst_64 : f32 to vector<1x8xf32>
    %312 = arith.mulf %311, %1 : vector<1x8xf32>
    %313 = arith.addf %310, %312 : vector<1x8xf32>
    %314 = arith.mulf %285, %269 : vector<1x8xf32>
    %315 = arith.mulf %286, %272 : vector<1x8xf32>
    %316 = arith.addf %314, %315 : vector<1x8xf32>
    %317 = arith.mulf %285, %272 : vector<1x8xf32>
    %318 = arith.mulf %286, %269 : vector<1x8xf32>
    %319 = arith.subf %317, %318 : vector<1x8xf32>
    %320 = arith.mulf %285, %275 : vector<1x8xf32>
    %321 = arith.mulf %286, %278 : vector<1x8xf32>
    %322 = arith.addf %320, %321 : vector<1x8xf32>
    %323 = arith.mulf %285, %278 : vector<1x8xf32>
    %324 = arith.mulf %286, %275 : vector<1x8xf32>
    %325 = arith.subf %323, %324 : vector<1x8xf32>
    %326 = arith.mulf %285, %281 : vector<1x8xf32>
    %327 = arith.mulf %286, %284 : vector<1x8xf32>
    %328 = arith.addf %326, %327 : vector<1x8xf32>
    %329 = arith.mulf %285, %284 : vector<1x8xf32>
    %330 = arith.mulf %286, %281 : vector<1x8xf32>
    %331 = arith.subf %329, %330 : vector<1x8xf32>
    %c0_65 = arith.constant 0 : index
    %c0_66 = arith.constant 0 : index
    %332 = vector.load %arg7[%c0_65, %c0_66] : memref<16x8xf32, #tpu.memory_space<vmem>>, vector<1x8xf32>
    tpu.vector_store %arg7[%c0_65, %c0_66], %295 {strides = array<i32>} : memref<16x8xf32, #tpu.memory_space<vmem>>, vector<1x8xf32>,
    %c1 = arith.constant 1 : index
    %c0_67 = arith.constant 0 : index
    %333 = vector.load %arg7[%c1, %c0_67] : memref<16x8xf32, #tpu.memory_space<vmem>>, vector<1x8xf32>
    tpu.vector_store %arg7[%c1, %c0_67], %304 {strides = array<i32>} : memref<16x8xf32, #tpu.memory_space<vmem>>, vector<1x8xf32>,
    %c2 = arith.constant 2 : index
    %c0_68 = arith.constant 0 : index
    %334 = vector.load %arg7[%c2, %c0_68] : memref<16x8xf32, #tpu.memory_space<vmem>>, vector<1x8xf32>
    tpu.vector_store %arg7[%c2, %c0_68], %313 {strides = array<i32>} : memref<16x8xf32, #tpu.memory_space<vmem>>, vector<1x8xf32>,
    %c3 = arith.constant 3 : index
    %c0_69 = arith.constant 0 : index
    %335 = vector.load %arg7[%c3, %c0_69] : memref<16x8xf32, #tpu.memory_space<vmem>>, vector<1x8xf32>
    tpu.vector_store %arg7[%c3, %c0_69], %316 {strides = array<i32>} : memref<16x8xf32, #tpu.memory_space<vmem>>, vector<1x8xf32>,
    %c4 = arith.constant 4 : index
    %c0_70 = arith.constant 0 : index
    %336 = vector.load %arg7[%c4, %c0_70] : memref<16x8xf32, #tpu.memory_space<vmem>>, vector<1x8xf32>
    tpu.vector_store %arg7[%c4, %c0_70], %319 {strides = array<i32>} : memref<16x8xf32, #tpu.memory_space<vmem>>, vector<1x8xf32>,
    %c5 = arith.constant 5 : index
    %c0_71 = arith.constant 0 : index
    %337 = vector.load %arg7[%c5, %c0_71] : memref<16x8xf32, #tpu.memory_space<vmem>>, vector<1x8xf32>
    tpu.vector_store %arg7[%c5, %c0_71], %2 {strides = array<i32>} : memref<16x8xf32, #tpu.memory_space<vmem>>, vector<1x8xf32>,
    %c6 = arith.constant 6 : index
    %c0_72 = arith.constant 0 : index
    %338 = vector.load %arg7[%c6, %c0_72] : memref<16x8xf32, #tpu.memory_space<vmem>>, vector<1x8xf32>
    tpu.vector_store %arg7[%c6, %c0_72], %322 {strides = array<i32>} : memref<16x8xf32, #tpu.memory_space<vmem>>, vector<1x8xf32>,
    %c7 = arith.constant 7 : index
    %c0_73 = arith.constant 0 : index
    %339 = vector.load %arg7[%c7, %c0_73] : memref<16x8xf32, #tpu.memory_space<vmem>>, vector<1x8xf32>
    tpu.vector_store %arg7[%c7, %c0_73], %325 {strides = array<i32>} : memref<16x8xf32, #tpu.memory_space<vmem>>, vector<1x8xf32>,
    %c8 = arith.constant 8 : index
    %c0_74 = arith.constant 0 : index
    %340 = vector.load %arg7[%c8, %c0_74] : memref<16x8xf32, #tpu.memory_space<vmem>>, vector<1x8xf32>
    tpu.vector_store %arg7[%c8, %c0_74], %2 {strides = array<i32>} : memref<16x8xf32, #tpu.memory_space<vmem>>, vector<1x8xf32>,
    %c9 = arith.constant 9 : index
    %c0_75 = arith.constant 0 : index
    %341 = vector.load %arg7[%c9, %c0_75] : memref<16x8xf32, #tpu.memory_space<vmem>>, vector<1x8xf32>
    tpu.vector_store %arg7[%c9, %c0_75], %328 {strides = array<i32>} : memref<16x8xf32, #tpu.memory_space<vmem>>, vector<1x8xf32>,
    %c10 = arith.constant 10 : index
    %c0_76 = arith.constant 0 : index
    %342 = vector.load %arg7[%c10, %c0_76] : memref<16x8xf32, #tpu.memory_space<vmem>>, vector<1x8xf32>
    tpu.vector_store %arg7[%c10, %c0_76], %331 {strides = array<i32>} : memref<16x8xf32, #tpu.memory_space<vmem>>, vector<1x8xf32>,
    %c11 = arith.constant 11 : index
    %c0_77 = arith.constant 0 : index
    %343 = vector.load %arg7[%c11, %c0_77] : memref<16x8xf32, #tpu.memory_space<vmem>>, vector<1x8xf32>
    tpu.vector_store %arg7[%c11, %c0_77], %1 {strides = array<i32>} : memref<16x8xf32, #tpu.memory_space<vmem>>, vector<1x8xf32>,
    %cst_78 = arith.constant 0.000000e+00 : f32
    %344 = vector.broadcast %cst_78 : f32 to vector<4x8xf32>
    %c12 = arith.constant 12 : index
    %c0_79 = arith.constant 0 : index
    %345 = vector.load %arg7[%c12, %c0_79] : memref<16x8xf32, #tpu.memory_space<vmem>>, vector<4x8xf32>
    tpu.vector_store %arg7[%c12, %c0_79], %344 {strides = array<i32>} : memref<16x8xf32, #tpu.memory_space<vmem>>, vector<4x8xf32>,
    %c0_80 = arith.constant 0 : index
    %c0_81 = arith.constant 0 : index
    %346 = vector.load %arg7[%c0_80, %c0_81] : memref<16x8xf32, #tpu.memory_space<vmem>>, vector<16x8xf32>
    %c0_82 = arith.constant 0 : index
    %c0_83 = arith.constant 0 : index
    %347 = vector.load %arg2[%c0_82, %c0_83] : memref<32x16xbf16, #tpu.memory_space<vmem>>, vector<32x16xbf16>
    %348 = arith.truncf %346 : vector<16x8xf32> to vector<16x8xbf16>
    %cst_84 = arith.constant dense<0.000000e+00> : vector<32x8xf32>
    %349 = tpu.matmul %347, %348, %cst_84 {dimension_numbers = #tpu.dot_dimension_numbers<[1], [0], [0], [1], [0, 0, 1, 1], [], []>} : vector<32x16xbf16>, vector<16x8xbf16>, vector<32x8xf32> -> vector<32x8xf32>
    %c0_85 = arith.constant 0 : index
    %c0_86 = arith.constant 0 : index
    %350 = vector.load %arg3[%c0_85, %c0_86] : memref<32x1xf32, #tpu.memory_space<vmem>>, vector<32x1xf32>
    %351 = vector.broadcast %350 : vector<32x1xf32> to vector<32x8xf32>
    %352 = arith.addf %349, %351 : vector<32x8xf32>
    %353 = arith.negf %352 : vector<32x8xf32>
    %354 = math.exp %353 : vector<32x8xf32>
    %cst_87 = arith.constant 1.000000e+00 : f32
    %355 = vector.broadcast %cst_87 : f32 to vector<32x8xf32>
    %356 = arith.addf %355, %354 : vector<32x8xf32>
    %357 = arith.divf %355, %356 : vector<32x8xf32>
    %358 = arith.mulf %352, %357 : vector<32x8xf32>
    %c0_88 = arith.constant 0 : index
    %c0_89 = arith.constant 0 : index
    %359 = vector.load %arg4[%c0_88, %c0_89] : memref<32x32xbf16, #tpu.memory_space<vmem>>, vector<32x32xbf16>
    %360 = arith.truncf %358 : vector<32x8xf32> to vector<32x8xbf16>
    %cst_90 = arith.constant dense<0.000000e+00> : vector<32x8xf32>
    %361 = tpu.matmul %359, %360, %cst_90 {dimension_numbers = #tpu.dot_dimension_numbers<[1], [0], [0], [1], [0, 0, 1, 1], [], []>} : vector<32x32xbf16>, vector<32x8xbf16>, vector<32x8xf32> -> vector<32x8xf32>
    %c0_91 = arith.constant 0 : index
    %c0_92 = arith.constant 0 : index
    %362 = vector.load %arg5[%c0_91, %c0_92] : memref<32x1xf32, #tpu.memory_space<vmem>>, vector<32x1xf32>
    %363 = vector.broadcast %362 : vector<32x1xf32> to vector<32x8xf32>
    %364 = arith.addf %361, %363 : vector<32x8xf32>
    %c0_93 = arith.constant 0 : index
    %c0_94 = arith.constant 0 : index
    %365 = vector.load %arg6[%c0_93, %c0_94] : memref<32x8xf32, #tpu.memory_space<vmem>>, vector<32x8xf32>
    tpu.vector_store %arg6[%c0_93, %c0_94], %364 {strides = array<i32>} : memref<32x8xf32, #tpu.memory_space<vmem>>, vector<32x8xf32>,
    return
  }
  func.func @transform_0(%arg0: i32) -> (i32, i32) {
    %c0_i32 = arith.constant 0 : i32
    %c0_i32_0 = arith.constant 0 : i32
    return %c0_i32, %arg0 : i32, i32
  }
  func.func @transform_1(%arg0: i32) -> (i32, i32) {
    %c0_i32 = arith.constant 0 : i32
    %c0_i32_0 = arith.constant 0 : i32
    %c0_i32_1 = arith.constant 0 : i32
    return %c0_i32, %c0_i32_0 : i32, i32
  }
  func.func @transform_2(%arg0: i32) -> (i32, i32) {
    %c0_i32 = arith.constant 0 : i32
    %c0_i32_0 = arith.constant 0 : i32
    %c0_i32_1 = arith.constant 0 : i32
    return %c0_i32, %c0_i32_0 : i32, i32
  }
  func.func @transform_3(%arg0: i32) -> (i32, i32) {
    %c0_i32 = arith.constant 0 : i32
    %c0_i32_0 = arith.constant 0 : i32
    %c0_i32_1 = arith.constant 0 : i32
    return %c0_i32, %c0_i32_0 : i32, i32
  }
  func.func @transform_4(%arg0: i32) -> (i32, i32) {
    %c0_i32 = arith.constant 0 : i32
    %c0_i32_0 = arith.constant 0 : i32
    %c0_i32_1 = arith.constant 0 : i32
    return %c0_i32, %c0_i32_0 : i32, i32
  }
  func.func @transform_5(%arg0: i32) -> (i32, i32) {
    %c0_i32 = arith.constant 0 : i32
    %c0_i32_0 = arith.constant 0 : i32
    return %c0_i32, %arg0 : i32, i32
  }
}

</mosaic_0001>

<llo_original>
// kernel: _forward.1
$region0: #{_forward.1}
  #allocation0 [shape = 'u32[]', space=smem, size = 0x4, offset = 0x4, fixed_abs, tag = 'smem constant byte address 0x4 - core index']
  #allocation1 [shape = 'u32[144,128]{1,0:T(1,128)}', space=vmem, size = 0x12000, scoped, tag = 'internal scratch']
  #allocation2 [shape = 'f32[16,8]{1,0:T(8,128)}', space=vmem, size = 0x2000, scoped, tag = 'scratch operand']
  %s0 = inlined_call_operand.vmem [shape: f32[14,8], index: 0, kind: input, shape index: {}]
  %s1 = inlined_call_operand.vmem [shape: bf16[32,16], index: 1, kind: input, shape index: {}]
  %s2 = inlined_call_operand.vmem [shape: f32[32,1], index: 2, kind: input, shape index: {}]
  %s3 = inlined_call_operand.vmem [shape: bf16[32,32], index: 3, kind: input, shape index: {}]
  %s4 = inlined_call_operand.vmem [shape: f32[32,1], index: 4, kind: input, shape index: {}]
  %s5 = inlined_call_operand.vmem [shape: f32[32,8], index: 5, kind: output, shape index: {}]
  %s6 = sld [smem:[#allocation0]]
  $region30: #{_forward.1} parent=0
    _
  %s8 = ssub.s32 1, %s6
  %s9 = scalar_select 0, %s8, %s6
  // Predicated region
  $region2: #{_forward.1} parent=0 // pred_check
    _
  $region3: #{_forward.1} parent=0 // pred_check_branch
    %11 = sbr.rel (0) target = $region5
  $region4: #{_forward.1} parent=0 // pred_region
    _
  $region5: #{_forward.1} parent=0 // pred_fallthru
    _
  // Predicated region
  $region6: #{_forward.1} parent=0 // pred_check
    _
  $region7: #{_forward.1} parent=0 // pred_check_branch
    %13 = sbr.rel (0) target = $region9
  $region8: #{_forward.1} parent=0 // pred_region
    _
  $region9: #{_forward.1} parent=0 // pred_fallthru
    _
  // Predicated region
  $region10: #{_forward.1} parent=0 // pred_check
    _
  $region11: #{_forward.1} parent=0 // pred_check_branch
    %15 = sbr.rel (0) target = $region13
  $region12: #{_forward.1} parent=0 // pred_region
    _
  $region13: #{_forward.1} parent=0 // pred_fallthru
    _
  // Predicated region
  $region14: #{_forward.1} parent=0 // pred_check
    _
  $region15: #{_forward.1} parent=0 // pred_check_branch
    %17 = sbr.rel (0) target = $region17
  $region16: #{_forward.1} parent=0 // pred_region
    _
  $region17: #{_forward.1} parent=0 // pred_fallthru
    _
  // Predicated region
  $region18: #{_forward.1} parent=0 // pred_check
    _
  $region19: #{_forward.1} parent=0 // pred_check_branch
    %19 = sbr.rel (0) target = $region21
  $region20: #{_forward.1} parent=0 // pred_region
    _
  $region21: #{_forward.1} parent=0 // pred_fallthru
    _
  %v21 = vld [vmem:[%s0] sm:$0xff]
  %v22 = vld [vmem:[%s0 + $0x8] sm:$0x3f]
  %v23 = vmul.f32 %v21, 0.0
  %v25 = vrot.slane %v23, 7
  %v27 = vadd.f32 %v21, %v25
  %v29 = vrot.slane %v21, 7
  %v31 = vsub.f32 %v23, %v29
  %v32 = vadd.f32 %v23, %v29
  %v33 = vsub.f32 %v21, %v25
  %v34 = vadd.f32 %v23, %v25
  %v35 = vsub.f32 %v23, %v25
  %v36 = vmul.f32 %v27, -0.05976987
  %v37 = vadd.f32 %v36, 0.12615286
  %v38 = vmul.f32 %v31, -0.013832844
  %v39 = vadd.f32 %v37, %v38
  %v40 = vmul.f32 %v32, -0.05976987
  %v41 = vadd.f32 %v40, -0.04046951
  %v42 = vmul.f32 %v33, -0.013832844
  %v43 = vadd.f32 %v41, %v42
  %v44 = vmul.f32 %v34, -0.05976987
  %v45 = vadd.f32 %v44, 0.0007011489
  %v46 = vmul.f32 %v35, -0.013832844
  %v47 = vadd.f32 %v45, %v46
  %v48 = vadd.f32 %v47, -0.032052834
  %v50 = vrot.slane %v27, 7
  %v52 = vmul.f32 %v21, %v50
  %v53 = vmul.f32 %v22, %v31
  %v55 = vrot.slane %v53, 7
  %v57 = vadd.f32 %v52, %v55
  %v59 = vrot.slane %v31, 7
  %v61 = vmul.f32 %v21, %v59
  %v62 = vmul.f32 %v22, %v27
  %v64 = vrot.slane %v62, 7
  %v66 = vsub.f32 %v61, %v64
  %v68 = vrot.slane %v32, 7
  %v70 = vmul.f32 %v21, %v68
  %v71 = vmul.f32 %v22, %v33
  %v73 = vrot.slane %v71, 7
  %v75 = vadd.f32 %v70, %v73
  %v77 = vrot.slane %v33, 7
  %v79 = vmul.f32 %v21, %v77
  %v80 = vmul.f32 %v22, %v32
  %v82 = vrot.slane %v80, 7
  %v84 = vsub.f32 %v79, %v82
  %v86 = vrot.slane %v34, 7
  %v88 = vmul.f32 %v21, %v86
  %v89 = vmul.f32 %v22, %v35
  %v91 = vrot.slane %v89, 7
  %v93 = vadd.f32 %v88, %v91
  %v95 = vrot.slane %v35, 7
  %v97 = vmul.f32 %v21, %v95
  %v98 = vmul.f32 %v22, %v34
  %v100 = vrot.slane %v98, 7
  %v102 = vsub.f32 %v97, %v100
  %v103 = vmul.f32 %v57, 0.068532296
  %v105 = vrot.slane %v103, 1
  %v107 = vadd.f32 %v39, %v105
  %v108 = vmul.f32 %v66, 0.034254994
  %v110 = vrot.slane %v108, 1
  %v112 = vadd.f32 %v107, %v110
  %v113 = vmul.f32 %v75, 0.068532296
  %v115 = vrot.slane %v113, 1
  %v117 = vadd.f32 %v43, %v115
  %v118 = vmul.f32 %v84, 0.034254994
  %v120 = vrot.slane %v118, 1
  %v122 = vadd.f32 %v117, %v120
  %v123 = vmul.f32 %v93, 0.068532296
  %v125 = vrot.slane %v123, 1
  %v127 = vadd.f32 %v48, %v125
  %v128 = vmul.f32 %v102, 0.034254994
  %v130 = vrot.slane %v128, 1
  %v132 = vadd.f32 %v127, %v130
  %v133 = vadd.f32 %v132, -0.16647539
  %v135 = vrot.slane %v57, 7
  %v137 = vmul.f32 %v21, %v135
  %v138 = vmul.f32 %v22, %v66
  %v140 = vrot.slane %v138, 7
  %v142 = vadd.f32 %v137, %v140
  %v144 = vrot.slane %v66, 7
  %v146 = vmul.f32 %v21, %v144
  %v147 = vmul.f32 %v22, %v57
  %v149 = vrot.slane %v147, 7
  %v151 = vsub.f32 %v146, %v149
  %v153 = vrot.slane %v75, 7
  %v155 = vmul.f32 %v21, %v153
  %v156 = vmul.f32 %v22, %v84
  %v158 = vrot.slane %v156, 7
  %v160 = vadd.f32 %v155, %v158
  %v162 = vrot.slane %v84, 7
  %v164 = vmul.f32 %v21, %v162
  %v165 = vmul.f32 %v22, %v75
  %v167 = vrot.slane %v165, 7
  %v169 = vsub.f32 %v164, %v167
  %v171 = vrot.slane %v93, 7
  %v173 = vmul.f32 %v21, %v171
  %v174 = vmul.f32 %v22, %v102
  %v176 = vrot.slane %v174, 7
  %v178 = vadd.f32 %v173, %v176
  %v180 = vrot.slane %v102, 7
  %v182 = vmul.f32 %v21, %v180
  %v183 = vmul.f32 %v22, %v93
  %v185 = vrot.slane %v183, 7
  %v187 = vsub.f32 %v182, %v185
  %v188 = vmul.f32 %v142, 0.108690225
  %v190 = vrot.slane %v188, 2
  %v192 = vadd.f32 %v112, %v190
  %v193 = vmul.f32 %v151, 0.07478112
  %v195 = vrot.slane %v193, 2
  %v197 = vadd.f32 %v192, %v195
  %v198 = vadd.f32 %v197, 0.0
  %v199 = vmul.f32 %v160, 0.108690225
  %v201 = vrot.slane %v199, 2
  %v203 = vadd.f32 %v122, %v201
  %v204 = vmul.f32 %v169, 0.07478112
  %v206 = vrot.slane %v204, 2
  %v208 = vadd.f32 %v203, %v206
  %v209 = vadd.f32 %v208, 0.0
  %v210 = vmul.f32 %v178, 0.108690225
  %v212 = vrot.slane %v210, 2
  %v214 = vadd.f32 %v133, %v212
  %v215 = vmul.f32 %v187, 0.07478112
  %v217 = vrot.slane %v215, 2
  %v219 = vadd.f32 %v214, %v217
  %v220 = vadd.f32 %v219, 0.09414642
  %v222 = vrot.slane %v142, 7
  %v224 = vmul.f32 %v21, %v222
  %v225 = vmul.f32 %v22, %v151
  %v227 = vrot.slane %v225, 7
  %v229 = vadd.f32 %v224, %v227
  %v231 = vrot.slane %v151, 7
  %v233 = vmul.f32 %v21, %v231
  %v234 = vmul.f32 %v22, %v142
  %v236 = vrot.slane %v234, 7
  %v238 = vsub.f32 %v233, %v236
  %v240 = vrot.slane %v160, 7
  %v242 = vmul.f32 %v21, %v240
  %v243 = vmul.f32 %v22, %v169
  %v245 = vrot.slane %v243, 7
  %v247 = vadd.f32 %v242, %v245
  %v249 = vrot.slane %v169, 7
  %v251 = vmul.f32 %v21, %v249
  %v252 = vmul.f32 %v22, %v160
  %v254 = vrot.slane %v252, 7
  %v256 = vsub.f32 %v251, %v254
  %v258 = vrot.slane %v178, 7
  %v260 = vmul.f32 %v21, %v258
  %v261 = vmul.f32 %v22, %v187
  %v263 = vrot.slane %v261, 7
  %v265 = vadd.f32 %v260, %v263
  %v267 = vrot.slane %v187, 7
  %v269 = vmul.f32 %v21, %v267
  %v270 = vmul.f32 %v22, %v178
  %v272 = vrot.slane %v270, 7
  %v274 = vsub.f32 %v269, %v272
  %v275 = vmul.f32 %v229, -0.06341658
  %v277 = vrot.slane %v275, 3
  %v279 = vadd.f32 %v198, %v277
  %v280 = vmul.f32 %v238, 0.059708487
  %v282 = vrot.slane %v280, 3
  %v284 = vadd.f32 %v279, %v282
  %v285 = vadd.f32 %v284, 0.0
  %v286 = vmul.f32 %v247, -0.06341658
  %v288 = vrot.slane %v286, 3
  %v290 = vadd.f32 %v209, %v288
  %v291 = vmul.f32 %v256, 0.059708487
  %v293 = vrot.slane %v291, 3
  %v295 = vadd.f32 %v290, %v293
  %v296 = vadd.f32 %v295, 0.0
  %v297 = vmul.f32 %v265, -0.06341658
  %v299 = vrot.slane %v297, 3
  %v301 = vadd.f32 %v220, %v299
  %v302 = vmul.f32 %v274, 0.059708487
  %v304 = vrot.slane %v302, 3
  %v306 = vadd.f32 %v301, %v304
  %v307 = vadd.f32 %v306, 0.16447882
  %v309 = vrot.slane %v229, 7
  %v311 = vmul.f32 %v21, %v309
  %v312 = vmul.f32 %v22, %v238
  %v314 = vrot.slane %v312, 7
  %v316 = vadd.f32 %v311, %v314
  %v318 = vrot.slane %v238, 7
  %v320 = vmul.f32 %v21, %v318
  %v321 = vmul.f32 %v22, %v229
  %v323 = vrot.slane %v321, 7
  %v325 = vsub.f32 %v320, %v323
  %v327 = vrot.slane %v247, 7
  %v329 = vmul.f32 %v21, %v327
  %v330 = vmul.f32 %v22, %v256
  %v332 = vrot.slane %v330, 7
  %v334 = vadd.f32 %v329, %v332
  %v336 = vrot.slane %v256, 7
  %v338 = vmul.f32 %v21, %v336
  %v339 = vmul.f32 %v22, %v247
  %v341 = vrot.slane %v339, 7
  %v343 = vsub.f32 %v338, %v341
  %v345 = vrot.slane %v265, 7
  %v347 = vmul.f32 %v21, %v345
  %v348 = vmul.f32 %v22, %v274
  %v350 = vrot.slane %v348, 7
  %v352 = vadd.f32 %v347, %v350
  %v354 = vrot.slane %v274, 7
  %v356 = vmul.f32 %v21, %v354
  %v357 = vmul.f32 %v22, %v265
  %v359 = vrot.slane %v357, 7
  %v361 = vsub.f32 %v356, %v359
  %v362 = vmul.f32 %v316, -0.09750944
  %v364 = vrot.slane %v362, 4
  %v366 = vadd.f32 %v285, %v364
  %v367 = vmul.f32 %v325, -0.0069561163
  %v369 = vrot.slane %v367, 4
  %v371 = vadd.f32 %v366, %v369
  %v372 = vmul.f32 %v334, -0.09750944
  %v374 = vrot.slane %v372, 4
  %v376 = vadd.f32 %v296, %v374
  %v377 = vmul.f32 %v343, -0.0069561163
  %v379 = vrot.slane %v377, 4
  %v381 = vadd.f32 %v376, %v379
  %v382 = vmul.f32 %v352, -0.09750944
  %v384 = vrot.slane %v382, 4
  %v386 = vadd.f32 %v307, %v384
  %v387 = vmul.f32 %v361, -0.0069561163
  %v389 = vrot.slane %v387, 4
  %v391 = vadd.f32 %v386, %v389
  %v392 = vadd.f32 %v391, -0.106135
  %v394 = vrot.slane %v316, 7
  %v396 = vmul.f32 %v21, %v394
  %v397 = vmul.f32 %v22, %v325
  %v399 = vrot.slane %v397, 7
  %v401 = vadd.f32 %v396, %v399
  %v403 = vrot.slane %v325, 7
  %v405 = vmul.f32 %v21, %v403
  %v406 = vmul.f32 %v22, %v316
  %v408 = vrot.slane %v406, 7
  %v410 = vsub.f32 %v405, %v408
  %v412 = vrot.slane %v334, 7
  %v414 = vmul.f32 %v21, %v412
  %v415 = vmul.f32 %v22, %v343
  %v417 = vrot.slane %v415, 7
  %v419 = vadd.f32 %v414, %v417
  %v421 = vrot.slane %v343, 7
  %v423 = vmul.f32 %v21, %v421
  %v424 = vmul.f32 %v22, %v334
  %v426 = vrot.slane %v424, 7
  %v428 = vsub.f32 %v423, %v426
  %v430 = vrot.slane %v352, 7
  %v432 = vmul.f32 %v21, %v430
  %v433 = vmul.f32 %v22, %v361
  %v435 = vrot.slane %v433, 7
  %v437 = vadd.f32 %v432, %v435
  %v439 = vrot.slane %v361, 7
  %v441 = vmul.f32 %v21, %v439
  %v442 = vmul.f32 %v22, %v352
  %v444 = vrot.slane %v442, 7
  %v446 = vsub.f32 %v441, %v444
  %v447 = vmul.f32 %v401, 0.08271314
  %v449 = vrot.slane %v447, 5
  %v451 = vadd.f32 %v371, %v449
  %v452 = vmul.f32 %v410, -0.0028942246
  %v454 = vrot.slane %v452, 5
  %v456 = vadd.f32 %v451, %v454
  %v457 = vmul.f32 %v419, 0.08271314
  %v459 = vrot.slane %v457, 5
  %v461 = vadd.f32 %v381, %v459
  %v462 = vmul.f32 %v428, -0.0028942246
  %v464 = vrot.slane %v462, 5
  %v466 = vadd.f32 %v461, %v464
  %v467 = vmul.f32 %v437, 0.08271314
  %v469 = vrot.slane %v467, 5
  %v471 = vadd.f32 %v392, %v469
  %v472 = vmul.f32 %v446, -0.0028942246
  %v474 = vrot.slane %v472, 5
  %v476 = vadd.f32 %v471, %v474
  %v477 = vadd.f32 %v476, -0.045568656
  %v479 = vrot.slane %v401, 7
  %v481 = vmul.f32 %v21, %v479
  %v482 = vmul.f32 %v22, %v410
  %v484 = vrot.slane %v482, 7
  %v486 = vadd.f32 %v481, %v484
  %v488 = vrot.slane %v410, 7
  %v490 = vmul.f32 %v21, %v488
  %v491 = vmul.f32 %v22, %v401
  %v493 = vrot.slane %v491, 7
  %v495 = vsub.f32 %v490, %v493
  %v497 = vrot.slane %v419, 7
  %v499 = vmul.f32 %v21, %v497
  %v500 = vmul.f32 %v22, %v428
  %v502 = vrot.slane %v500, 7
  %v504 = vadd.f32 %v499, %v502
  %v506 = vrot.slane %v428, 7
  %v508 = vmul.f32 %v21, %v506
  %v509 = vmul.f32 %v22, %v419
  %v511 = vrot.slane %v509, 7
  %v513 = vsub.f32 %v508, %v511
  %v515 = vrot.slane %v437, 7
  %v517 = vmul.f32 %v21, %v515
  %v518 = vmul.f32 %v22, %v446
  %v520 = vrot.slane %v518, 7
  %v522 = vadd.f32 %v517, %v520
  %v524 = vrot.slane %v446, 7
  %v526 = vmul.f32 %v21, %v524
  %v527 = vmul.f32 %v22, %v437
  %v529 = vrot.slane %v527, 7
  %v531 = vsub.f32 %v526, %v529
  %vm532 = vcmask 57344
  %533 = vst.msk [vmem:[#allocation2] sm:$0x1] %vm532, %v456
  %534 = vst.msk [vmem:[#allocation2 + $0x1] sm:$0x1] %vm532, %v466
  %535 = vst.msk [vmem:[#allocation2 + $0x2] sm:$0x1] %vm532, %v477
  %vm536 = vcmask 63494
  %537 = vst.msk [vmem:[#allocation2 - $0x3] sm:$0x40] %vm536, %v486
  %538 = vst.msk [vmem:[#allocation2 - $0x2] sm:$0x40] %vm536, %v495
  %539 = vst.msk [vmem:[#allocation2 + $0x5] sm:$0x1] %vm532, 0.0
  %540 = vst.msk [vmem:[#allocation2] sm:$0x40] %vm536, %v504
  %541 = vst.msk [vmem:[#allocation2 + $0x1] sm:$0x40] %vm536, %v513
  %542 = vst.msk [vmem:[#allocation2 + $0x8] sm:$0x1] %vm532, 0.0
  %543 = vst.msk [vmem:[#allocation2 + $0x3] sm:$0x40] %vm536, %v522
  %544 = vst.msk [vmem:[#allocation2 + $0x4] sm:$0x40] %vm536, %v531
  %545 = vst.msk [vmem:[#allocation2 + $0xb] sm:$0x1] %vm532, 1.0
  %vm546 = vcmask 60416
  %547 = vst.msk [vmem:[#allocation2 + $0xc] sm:$0xf] %vm546, 0.0
  %v548 = vld [vmem:[#allocation2] sm:$0xff]
  %v549 = vld [vmem:[#allocation2 + $0x8] sm:$0xff]
  %v550 = vld [vmem:[%s1] sm:$0xf]
  %v551 = vld [vmem:[%s1 + $0x4] sm:$0xf]
  %v552 = vld [vmem:[%s1 + $0x8] sm:$0xf]
  %v553 = vld [vmem:[%s1 + $0xc] sm:$0xf]
  %v554 = vpack.c.bf16 %v549, %v548
  %v555 = vld [vmem:[%s2] sm:$0xff]
  %v556 = vld [vmem:[%s2 + $0x8] sm:$0xff]
  %v557 = vld [vmem:[%s2 + $0x10] sm:$0xff]
  %v558 = vld [vmem:[%s2 + $0x18] sm:$0xff]
  %560 = vset.pattern.permute.xlu0 0
  %561 = vperm.xlu0 %560, %v555
  %v562 = vpop.permute.xlu0 %561
  %565 = vset.pattern.permute.xlu0 0
  %566 = vperm.xlu0 %565, %v556
  %v567 = vpop.permute.xlu0 %566
  %570 = vset.pattern.permute.xlu0 0
  %571 = vperm.xlu0 %570, %v557
  %v572 = vpop.permute.xlu0 %571
  %575 = vset.pattern.permute.xlu0 0
  %576 = vperm.xlu0 %575, %v558
  %v577 = vpop.permute.xlu0 %576
  %v583 = vunpack.c.l.b16 %v550
  %v584 = vunpack.c.l.b16 %v551
  %v585 = vunpack.c.l.b16 %v552
  %v586 = vunpack.c.l.b16 %v553
  %v587 = vpack.c.b16 %v584, %v583
  %v588 = vpack.c.b16 %v586, %v585
  %vm589 = vcmask 130048
  %v591 = vsel %vm589, %v587, 0
  %v594 = vsel %vm589, %v588, 0
  %596 = vmatprep.subr.bf16.mxu0 0
  %597 = vmatpush1.bf16.msra.mxu0 %v554
  %598 = vmatprep.subr.bf16.mxu0 0
  %599 = vmatpush1.bf16.msra.mxu0 0
  %600 = vmatprep.subr.bf16.mxu0 0
  %601 = vmatpush1.bf16.msra.mxu0 0
  %602 = vmatprep.subr.bf16.mxu0 0
  %603 = vmatpush1.bf16.msra.mxu0 0
  %604 = vmatprep.subr.bf16.mxu0 0
  %605 = vmatpush1.bf16.msra.mxu0 0
  %606 = vmatprep.subr.bf16.mxu0 0
  %607 = vmatpush1.bf16.msra.mxu0 0
  %608 = vmatprep.subr.bf16.mxu0 0
  %609 = vmatpush1.bf16.msra.mxu0 0
  %610 = vmatprep.subr.bf16.mxu0 0
  %611 = vmatpush1.bf16.msra.mxu0 0
  %612 = vmatprep.subr.bf16.mxu0 0
  %613 = vmatpush1.bf16.msra.mxu0 0
  %614 = vmatprep.subr.bf16.mxu0 0
  %615 = vmatpush1.bf16.msra.mxu0 0
  %616 = vmatprep.subr.bf16.mxu0 0
  %617 = vmatpush1.bf16.msra.mxu0 0
  %618 = vmatprep.subr.bf16.mxu0 0
  %619 = vmatpush1.bf16.msra.mxu0 0
  %620 = vmatprep.subr.bf16.mxu0 0
  %621 = vmatpush1.bf16.msra.mxu0 0
  %622 = vmatprep.subr.bf16.mxu0 0
  %623 = vmatpush1.bf16.msra.mxu0 0
  %624 = vmatprep.subr.bf16.mxu0 0
  %625 = vmatpush1.bf16.msra.mxu0 0
  %626 = vmatprep.subr.bf16.mxu0 0
  %627 = vmatpush1.bf16.msra.mxu0 0
  %628 = vmatprep.mubr.bf16.mxu0 0
  %629 = vmatmul.mubr.bf16.gmra.mrb[0].mxu0 %v591
  %v630 = vpop.f32.mrb[0].mxu0
  %v631 = vadd.f32 %v562, %v630
  %v632 = vpop.f32.mrb[0].mxu0
  %v633 = vpop.f32.mrb[0].mxu0
  %v634 = vadd.f32 %v567, %v633
  %v635 = vpop.f32.mrb[0].mxu0
  %636 = vmatprep.mubr.bf16.mxu0 0
  %637 = vmatmul.mubr.bf16.gmra.mrb[0].mxu0 %v594
  %v638 = vpop.f32.mrb[0].mxu0
  %v639 = vadd.f32 %v572, %v638
  %v640 = vpop.f32.mrb[0].mxu0
  %v641 = vpop.f32.mrb[0].mxu0
  %v642 = vadd.f32 %v577, %v641
  %v643 = vpop.f32.mrb[0].mxu0
  %644 = vdwg.mxu0
  %v645 = vxor.u32 %v631, 2147483648
  %v646 = vxor.u32 %v634, 2147483648
  %v647 = vxor.u32 %v639, 2147483648
  %v648 = vxor.u32 %v642, 2147483648
  %v649 = vmul.f32 %v645, 1.442695
  %v650 = vpow.pop %v649
  %v651 = vmul.f32 %v646, 1.442695
  %v652 = vpow.pop %v651
  %v653 = vmul.f32 %v647, 1.442695
  %v654 = vpow.pop %v653
  %v655 = vmul.f32 %v648, 1.442695
  %v656 = vpow.pop %v655
  %v657 = vadd.f32 %v650, 1.0
  %v658 = vadd.f32 %v652, 1.0
  %v659 = vadd.f32 %v654, 1.0
  %v660 = vadd.f32 %v656, 1.0
  %v661 = vrcp.pop %v657
  %v662 = vmul.f32 1.0, %v661
  %v663 = vrcp.pop %v658
  %v664 = vmul.f32 1.0, %v663
  %v665 = vrcp.pop %v659
  %v666 = vmul.f32 1.0, %v665
  %v667 = vrcp.pop %v660
  %v668 = vmul.f32 1.0, %v667
  %v669 = vmul.f32 %v631, %v662
  %v670 = vmul.f32 %v634, %v664
  %v671 = vmul.f32 %v639, %v666
  %v672 = vmul.f32 %v642, %v668
  %v673 = vld [vmem:[%s3] sm:$0xf]
  %v674 = vld [vmem:[%s3 + $0x4] sm:$0xf]
  %v675 = vld [vmem:[%s3 + $0x8] sm:$0xf]
  %v676 = vld [vmem:[%s3 + $0xc] sm:$0xf]
  %v677 = vpack.c.bf16 %v670, %v669
  %v678 = vpack.c.bf16 %v672, %v671
  %v679 = vld [vmem:[%s4] sm:$0xff]
  %v680 = vld [vmem:[%s4 + $0x8] sm:$0xff]
  %v681 = vld [vmem:[%s4 + $0x10] sm:$0xff]
  %v682 = vld [vmem:[%s4 + $0x18] sm:$0xff]
  %684 = vset.pattern.permute.xlu0 0
  %685 = vperm.xlu0 %684, %v679
  %v686 = vpop.permute.xlu0 %685
  %689 = vset.pattern.permute.xlu0 0
  %690 = vperm.xlu0 %689, %v680
  %v691 = vpop.permute.xlu0 %690
  %694 = vset.pattern.permute.xlu0 0
  %695 = vperm.xlu0 %694, %v681
  %v696 = vpop.permute.xlu0 %695
  %699 = vset.pattern.permute.xlu0 0
  %700 = vperm.xlu0 %699, %v682
  %v701 = vpop.permute.xlu0 %700
  %v707 = vunpack.c.l.b16 %v673
  %v708 = vunpack.c.l.b16 %v674
  %v709 = vunpack.c.l.b16 %v675
  %v710 = vunpack.c.l.b16 %v676
  %v711 = vpack.c.b16 %v708, %v707
  %v712 = vpack.c.b16 %v710, %v709
  %vm713 = vcmask 261120
  %v715 = vsel %vm713, %v711, 0
  %v718 = vsel %vm713, %v712, 0
  %720 = vmatprep.subr.bf16.mxu0 0
  %721 = vmatpush1.bf16.msra.mxu0 %v677
  %722 = vmatprep.subr.bf16.mxu0 0
  %723 = vmatpush1.bf16.msra.mxu0 %v678
  %724 = vmatprep.subr.bf16.mxu0 0
  %725 = vmatpush1.bf16.msra.mxu0 0
  %726 = vmatprep.subr.bf16.mxu0 0
  %727 = vmatpush1.bf16.msra.mxu0 0
  %728 = vmatprep.subr.bf16.mxu0 0
  %729 = vmatpush1.bf16.msra.mxu0 0
  %730 = vmatprep.subr.bf16.mxu0 0
  %731 = vmatpush1.bf16.msra.mxu0 0
  %732 = vmatprep.subr.bf16.mxu0 0
  %733 = vmatpush1.bf16.msra.mxu0 0
  %734 = vmatprep.subr.bf16.mxu0 0
  %735 = vmatpush1.bf16.msra.mxu0 0
  %736 = vmatprep.subr.bf16.mxu0 0
  %737 = vmatpush1.bf16.msra.mxu0 0
  %738 = vmatprep.subr.bf16.mxu0 0
  %739 = vmatpush1.bf16.msra.mxu0 0
  %740 = vmatprep.subr.bf16.mxu0 0
  %741 = vmatpush1.bf16.msra.mxu0 0
  %742 = vmatprep.subr.bf16.mxu0 0
  %743 = vmatpush1.bf16.msra.mxu0 0
  %744 = vmatprep.subr.bf16.mxu0 0
  %745 = vmatpush1.bf16.msra.mxu0 0
  %746 = vmatprep.subr.bf16.mxu0 0
  %747 = vmatpush1.bf16.msra.mxu0 0
  %748 = vmatprep.subr.bf16.mxu0 0
  %749 = vmatpush1.bf16.msra.mxu0 0
  %750 = vmatprep.subr.bf16.mxu0 0
  %751 = vmatpush1.bf16.msra.mxu0 0
  %752 = vmatprep.mubr.bf16.mxu0 0
  %753 = vmatmul.mubr.bf16.gmra.mrb[0].mxu0 %v715
  %v754 = vpop.f32.mrb[0].mxu0
  %v755 = vadd.f32 %v686, %v754
  %v756 = vpop.f32.mrb[0].mxu0
  %v757 = vpop.f32.mrb[0].mxu0
  %v758 = vadd.f32 %v691, %v757
  %v759 = vpop.f32.mrb[0].mxu0
  %760 = vmatprep.mubr.bf16.mxu0 0
  %761 = vmatmul.mubr.bf16.gmra.mrb[0].mxu0 %v718
  %v762 = vpop.f32.mrb[0].mxu0
  %v763 = vadd.f32 %v696, %v762
  %v764 = vpop.f32.mrb[0].mxu0
  %v765 = vpop.f32.mrb[0].mxu0
  %v766 = vadd.f32 %v701, %v765
  %v767 = vpop.f32.mrb[0].mxu0
  %768 = vdwg.mxu0
  %vm769 = vcmask 64512
  %770 = vst.msk [vmem:[%s5] sm:$0xff] %vm769, %v755
  %771 = vst.msk [vmem:[%s5 + $0x8] sm:$0xff] %vm769, %v758
  %772 = vst.msk [vmem:[%s5 + $0x10] sm:$0xff] %vm769, %v763
  %773 = vst.msk [vmem:[%s5 + $0x18] sm:$0xff] %vm769, %v766
  // Predicated region
  $region22: #{_forward.1} parent=0 // pred_check
    _
  $region23: #{_forward.1} parent=0 // pred_check_branch
    %775 = sbr.rel (0) target = $region25
  $region24: #{_forward.1} parent=0 // pred_region
    _
  $region25: #{_forward.1} parent=0 // pred_fallthru
    _
  // Predicated region
  $region26: #{_forward.1} parent=0 // pred_check
    _
  $region27: #{_forward.1} parent=0 // pred_check_branch
    %777 = sbr.rel (0) target = $region29
  $region28: #{_forward.1} parent=0 // pred_region
    _
  $region29: #{_forward.1} parent=0 // pred_fallthru
    _

</llo_original>
